<compile_context>
chip_gen: v6e
topology: v6e:2x2x1
jax: 0.10.0
libtpu: 0.0.40
codegen_flags: <defaults>
</compile_context>

<pallas_src>
import functools

import jax
import jax.numpy as jnp
import numpy as np
from jax.experimental import pallas as pl
from jax.experimental.pallas import tpu as pltpu


# ---------------------------------------------------------------------------
# Host-side glue: fused, pre-scaled inverse-DFT basis (cached per N).
# ---------------------------------------------------------------------------
@functools.lru_cache(maxsize=None)
def _idft_real_basis(n: int) -> np.ndarray:
    """W = [cos | -sin] / n, shape (n, 2n), float32.

    Built in float64 from an exact integer (k*m) % n so cos/sin arguments stay
    in [0, 2*pi) even for large n (no f32 argument-reduction error).
    """
    k = np.arange(n, dtype=np.int64)[:, None]
    m = np.arange(n, dtype=np.int64)[None, :]
    ang = ((k * m) % n).astype(np.float64) * (2.0 * np.pi / n)
    w = np.concatenate([np.cos(ang), -np.sin(ang)], axis=1) / float(n)
    return w.astype(np.float32)


def _round_up(x: int, m: int) -> int:
    return ((x + m - 1) // m) * m


def _pick_col_tile(cols: int) -> int:
    """Pick a lane-dense column tile: divides `cols`, multiple of 128, <= 512,
    preferring >= 2 column tiles so both v7x TensorCores get work."""
    m = cols // 128
    best = 1
    for g in range(1, min(m, 4) + 1):
        if m % g == 0:
            best = g
    if best == m and m >= 2:  # would be a single tile -> split for megacore
        for g in range(m - 1, 0, -1):
            if m % g == 0:
                best = g
                break
    return best * 128


# ---------------------------------------------------------------------------
# Kernel: one fused matmul tile with K-axis accumulation.
# ---------------------------------------------------------------------------
def _idft_real_kernel(w_ref, x_ref, o_ref, acc_ref):
    # w_ref:   (N, tk)   fused basis tile  [cos | -sin] / N  (scale folded in)
    # x_ref:   (tk, tn)  stacked [real; imag] input tile, lane axis = (batch*D)
    # o_ref:   (N, tn)   real part of ifft along the transform axis
    # acc_ref: (N, tn)   f32 accumulator, resident across the K grid axis
    kt = pl.program_id(1)

    @pl.when(kt == 0)
    def _init():
        acc_ref[...] = jnp.zeros_like(acc_ref)

    acc_ref[...] += jnp.dot(w_ref[...], x_ref[...],
                            preferred_element_type=jnp.float32)

    @pl.when(kt == pl.num_programs(1) - 1)
    def _finalize():
        o_ref[...] = acc_ref[...].astype(o_ref.dtype)


# ---------------------------------------------------------------------------
# Wrapper.
# ---------------------------------------------------------------------------
def inverse_fourier_transform(x_real, x_imag):
    """Real part of ifft(x, axis=1) with x = x_real + 1j*x_imag, shape (B, N, D)."""
    B, N, D = x_real.shape
    assert x_imag.shape == (B, N, D)

    # Fused, pre-scaled basis (host float64 -> f32 constant).
    w_np = _idft_real_basis(N)                          # (N, 2N)

    # Lane-dense layout: pad D to a multiple of 128, flatten (batch, D).
    Dp = max(128, _round_up(D, 128))
    xr, xi = x_real, x_imag
    if Dp != D:
        pad = ((0, 0), (0, 0), (0, Dp - D))
        xr = jnp.pad(xr, pad)
        xi = jnp.pad(xi, pad)

    # Stack real/imag along the contraction axis -> single matmul.
    xs = jnp.concatenate([xr, xi], axis=1)              # (B, 2N, Dp)
    xs = jnp.transpose(xs, (1, 0, 2)).reshape(2 * N, B * Dp)   # (2N, B*Dp)

    K = 2 * N
    cols = B * Dp

    # Contraction tiling: single K step while the basis block is small; tile
    # (and zero-pad K) for large N so per-step VMEM stays bounded (v7x 64 MiB).
    if K <= 1024:
        tk, Kp = K, K
    else:
        tk = 512
        Kp = _round_up(K, tk)
    if Kp != K:
        w_np = np.pad(w_np, ((0, 0), (0, Kp - K)))      # zero basis cols -> no-op terms
        xs = jnp.pad(xs, ((0, Kp - K), (0, 0)))
    w = jnp.asarray(w_np)                               # (N, Kp)

    tn = _pick_col_tile(cols)
    grid = (cols // tn, Kp // tk)

    # NOTE: the basis index_map is independent of the column axis; default
    # double-buffering over-reserves its VMEM slightly, but at these block
    # sizes the cost is negligible, so we keep the default pipelining.
    out2 = pl.pallas_call(
        _idft_real_kernel,
        out_shape=jax.ShapeDtypeStruct((N, cols), jnp.float32),
        grid_spec=pltpu.PrefetchScalarGridSpec(
            num_scalar_prefetch=0,
            grid=grid,
            in_specs=[
                pl.BlockSpec((N, tk), lambda j, k: (0, k)),   # fused basis tile
                pl.BlockSpec((tk, tn), lambda j, k: (k, j)),  # stacked input tile
            ],
            out_specs=pl.BlockSpec((N, tn), lambda j, k: (0, j)),
            scratch_shapes=[pltpu.VMEM((N, tn), jnp.float32)],
        ),
        compiler_params=pltpu.CompilerParams(
            dimension_semantics=("parallel", "arbitrary"),
            vmem_limit_bytes=64 * 1024 * 1024,
        ),
    )(w, xs)

    out = jnp.transpose(out2.reshape(N, B, Dp), (1, 0, 2))    # (B, N, Dp)
    if Dp != D:
        out = out[:, :, :D]
    return out


if __name__ == "__main__":
    # Small deterministic complex input: batch=2, fft-axis N=16, hidden D=128.
    B, N, D = 2, 16, 128
    key = jax.random.PRNGKey(0)
    kr, ki = jax.random.split(key)
    x_real = jax.random.normal(kr, (B, N, D), dtype=jnp.float32)
    x_imag = jax.random.normal(ki, (B, N, D), dtype=jnp.float32)

    fn = jax.jit(inverse_fourier_transform)
    out = jax.block_until_ready(fn(x_real, x_imag))

    # Reference: same semantics as torch.fft.ifft(x, dim=1).real
    x_complex = x_real.astype(jnp.complex64) + 1j * x_imag.astype(jnp.complex64)
    ref = jnp.fft.ifft(x_complex, axis=1).real
    np.testing.assert_allclose(np.asarray(out), np.asarray(ref), rtol=1e-4, atol=1e-4)

    print("KERNEL_OK")
</pallas_src>

<mosaic_0001>
module attributes {stable_mosaic.version = 11 : i64} {
  func.func @_idft_real_kernel(%arg0: i32, %arg1: i32, %arg2: memref<16x32xf32, #tpu.memory_space<vmem>>, %arg3: memref<32x128xf32, #tpu.memory_space<vmem>>, %arg4: memref<16x128xf32, #tpu.memory_space<vmem>>, %arg5: memref<16x128xf32, #tpu.memory_space<vmem>>) attributes {dimension_semantics = [#tpu.dimension_semantics<parallel>, #tpu.dimension_semantics<arbitrary>], iteration_bounds = array<i64: 2, 1>, scalar_prefetch = 0 : i64, scratch_operands = 1 : i64, tpu.core_type = #tpu.core_type<tc>, window_params = [{transform_indices = @transform_0, window_bounds = array<i64: 16, 32>}, {transform_indices = @transform_1, window_bounds = array<i64: 32, 128>}, {transform_indices = @transform_2, window_bounds = array<i64: 16, 128>}]} {
    %c0_i32 = arith.constant 0 : i32
    %0 = arith.cmpi eq, %arg1, %c0_i32 : i32
    %1 = arith.extui %0 : i1 to i32
    %c0_i32_0 = arith.constant 0 : i32
    %2 = arith.cmpi ne, %1, %c0_i32_0 : i32
    scf.if %2 {
      %cst_10 = arith.constant 0.000000e+00 : f32
      %12 = vector.broadcast %cst_10 : f32 to vector<16x128xf32>
      %c0_11 = arith.constant 0 : index
      %c0_12 = arith.constant 0 : index
      %13 = vector.load %arg5[%c0_11, %c0_12] : memref<16x128xf32, #tpu.memory_space<vmem>>, vector<16x128xf32>
      tpu.vector_store %arg5[%c0_11, %c0_12], %12 {strides = array<i32>} : memref<16x128xf32, #tpu.memory_space<vmem>>, vector<16x128xf32>,
    } else {
    }
    %c0 = arith.constant 0 : index
    %c0_1 = arith.constant 0 : index
    %3 = vector.load %arg5[%c0, %c0_1] : memref<16x128xf32, #tpu.memory_space<vmem>>, vector<16x128xf32>
    %c0_2 = arith.constant 0 : index
    %c0_3 = arith.constant 0 : index
    %4 = vector.load %arg2[%c0_2, %c0_3] : memref<16x32xf32, #tpu.memory_space<vmem>>, vector<16x32xf32>
    %c0_4 = arith.constant 0 : index
    %c0_5 = arith.constant 0 : index
    %5 = vector.load %arg3[%c0_4, %c0_5] : memref<32x128xf32, #tpu.memory_space<vmem>>, vector<32x128xf32>
    %cst = arith.constant dense<0.000000e+00> : vector<16x128xf32>
    %6 = tpu.matmul %4, %5, %cst {dimension_numbers = #tpu.dot_dimension_numbers<[1], [0], [0], [1], [0, 0, 1, 1], [], []>} : vector<16x32xf32>, vector<32x128xf32>, vector<16x128xf32> -> vector<16x128xf32>
    %7 = arith.addf %3, %6 : vector<16x128xf32>
    %c0_6 = arith.constant 0 : index
    %c0_7 = arith.constant 0 : index
    %8 = vector.load %arg5[%c0_6, %c0_7] : memref<16x128xf32, #tpu.memory_space<vmem>>, vector<16x128xf32>
    tpu.vector_store %arg5[%c0_6, %c0_7], %7 {strides = array<i32>} : memref<16x128xf32, #tpu.memory_space<vmem>>, vector<16x128xf32>,
    %c0_i32_8 = arith.constant 0 : i32
    %9 = arith.cmpi eq, %arg1, %c0_i32_8 : i32
    %10 = arith.extui %9 : i1 to i32
    %c0_i32_9 = arith.constant 0 : i32
    %11 = arith.cmpi ne, %10, %c0_i32_9 : i32
    scf.if %11 {
      %c0_10 = arith.constant 0 : index
      %c0_11 = arith.constant 0 : index
      %12 = vector.load %arg5[%c0_10, %c0_11] : memref<16x128xf32, #tpu.memory_space<vmem>>, vector<16x128xf32>
      %c0_12 = arith.constant 0 : index
      %c0_13 = arith.constant 0 : index
      %13 = vector.load %arg4[%c0_12, %c0_13] : memref<16x128xf32, #tpu.memory_space<vmem>>, vector<16x128xf32>
      tpu.vector_store %arg4[%c0_12, %c0_13], %12 {strides = array<i32>} : memref<16x128xf32, #tpu.memory_space<vmem>>, vector<16x128xf32>,
    } else {
    }
    return
  }
  func.func @transform_0(%arg0: i32, %arg1: i32) -> (i32, i32) {
    %c0_i32 = arith.constant 0 : i32
    %c0_i32_0 = arith.constant 0 : i32
    return %c0_i32, %arg1 : i32, i32
  }
  func.func @transform_1(%arg0: i32, %arg1: i32) -> (i32, i32) {
    %c0_i32 = arith.constant 0 : i32
    return %arg1, %arg0 : i32, i32
  }
  func.func @transform_2(%arg0: i32, %arg1: i32) -> (i32, i32) {
    %c0_i32 = arith.constant 0 : i32
    %c0_i32_0 = arith.constant 0 : i32
    return %c0_i32, %arg0 : i32, i32
  }
}

</mosaic_0001>

<llo_original>
// kernel: inverse_fourier_transform.1
$region0: #{inverse_fourier_transform.1}
  #allocation0 [shape = 'u32[]', space=smem, size = 0x4, offset = 0x4, fixed_abs, tag = 'smem constant byte address 0x4 - core index']
  #allocation1 [shape = 'u32[144,128]{1,0:T(1,128)}', space=vmem, size = 0x12000, scoped, tag = 'internal scratch']
  #allocation2 [shape = 'f32[16,128]{1,0:T(8,128)}', space=vmem, size = 0x2000, scoped, tag = 'scratch operand']
  %s0 = inlined_call_operand.vmem [shape: f32[16,32], index: 0, kind: input, shape index: {}]
  %s1 = inlined_call_operand.vmem [shape: f32[32,256], index: 1, kind: input, shape index: {}]
  %s2 = inlined_call_operand.vmem [shape: f32[16,256], index: 2, kind: output, shape index: {}]
  %s3 = sld [smem:[#allocation0]]
  $region121: #{inverse_fourier_transform.1} parent=0
    _
  %s5 = ssub.s32 1, %s3
  %s6 = scalar_select 0, %s5, %s3
  $region1: #{inverse_fourier_transform.1} parent=0
    #allocation3 [shape = 'u8[32768]{0}', space=vmem, size = 0x8000, scoped, tag = 'input window, operand 1']
    #allocation4 [shape = 'u8[16384]{0}', space=vmem, size = 0x4000, scoped, tag = 'output window, operand 0']
    loop: start=0, step=1, limit=4
    $region2: #{inverse_fourier_transform.1} parent=1 // loop_pre_header
      _
    $region3: #{inverse_fourier_transform.1} parent=1 // loop_header
      %s8 = sphi 0, %s12
      %p9 = scmp.ge.s32.totalorder %s8, 4
      %s15 = sphi 0, %s27
      %s16 = sphi 0, %s23
      %s17 = sphi 0, %s15
      %s18 = sphi 0, %s16
      %s19 = sphi 0, %s17
      %s20 = sphi 0, %s18
      %s30 = sphi 0, %s32
      %s33 = sphi 0, %s30
      %s34 = sphi 0, %s33
      %s50 = sphi 0, %s34
      %s58 = sphi 0, %s60
      %s61 = sphi 0, %s58
      %s62 = sphi 0, %s61
      %s78 = sphi 0, %s62
      %s84 = sphi 0, %s86
      %s87 = sphi 0, %s84
      %s88 = sphi 0, %s87
      %s104 = sphi 0, %s88
    $region4: #{inverse_fourier_transform.1} parent=1 // loop_header_branch
      %11 = sbr.rel (%p9) target = $region8
    $region5: #{inverse_fourier_transform.1} parent=1 // loop_body
      %s13 = ssub.s32 %s8, 1
      %s14 = ssub.s32 %s8, 2
      %s21 = sadd.s32 1, %s16
      %p22 = scmp.ge.s32.totalorder %s21, 1
      %s23 = scalar_select %p22, 0, %s21
      %s24 = sadd.s32 1, %s15
      %s25 = scalar_select %p22, %s24, %s15
      %p26 = scmp.ge.s32.totalorder %s25, 2
      %s27 = scalar_select %p26, 0, %s25
      %s28 = ssub.s32 %s16, %s23
      %p29 = scmp.eq.s32.totalorder %s28, 0
      %s31 = sadd.s32 %s30, 1
      %s32 = scalar_select %p29, %s30, %s31
      %p35 = pneg %p29
      %p36 = scmp.eq.s32.totalorder %s8, 1
      %p37 = por %p35, %p36
      %p38 = scmp.ne.s32.totalorder %s30, %s33
      %p39 = scmp.eq.s32.totalorder %s8, 0
      %p40 = por %p38, %p39
      %p41 = scmp.ne.s32.totalorder %s30, %s33
      %p42 = scmp.eq.s32.totalorder %s13, 1
      %p43 = por %p41, %p42
      %p44 = scmp.ne.s32.totalorder %s33, %s34
      %p45 = scmp.eq.s32.totalorder %s13, 0
      %p46 = por %p44, %p45
      %p47 = scmp.ne.s32.totalorder %s33, %s34
      %p48 = scmp.eq.s32.totalorder %s14, 1
      %p49 = por %p47, %p48
      %p51 = scmp.ne.s32.totalorder %s34, %s50
      %p52 = scmp.eq.s32.totalorder %s14, 0
      %p53 = por %p51, %p52
      %s54 = ssub.s32 %s16, %s23
      %s55 = ssub.s32 %s15, %s27
      %s56 = sor.u32 %s54, %s55
      %p57 = scmp.eq.s32.totalorder %s56, 0
      %s59 = sadd.s32 %s58, 1
      %s60 = scalar_select %p57, %s58, %s59
      %p63 = pneg %p57
      %p64 = scmp.eq.s32.totalorder %s8, 1
      %p65 = por %p63, %p64
      %p66 = scmp.ne.s32.totalorder %s58, %s61
      %p67 = scmp.eq.s32.totalorder %s8, 0
      %p68 = por %p66, %p67
      %p69 = scmp.ne.s32.totalorder %s58, %s61
      %p70 = scmp.eq.s32.totalorder %s13, 1
      %p71 = por %p69, %p70
      %p72 = scmp.ne.s32.totalorder %s61, %s62
      %p73 = scmp.eq.s32.totalorder %s13, 0
      %p74 = por %p72, %p73
      %p75 = scmp.ne.s32.totalorder %s61, %s62
      %p76 = scmp.eq.s32.totalorder %s14, 1
      %p77 = por %p75, %p76
      %p79 = scmp.ne.s32.totalorder %s62, %s78
      %p80 = scmp.eq.s32.totalorder %s14, 0
      %p81 = por %p79, %p80
      %s82 = ssub.s32 %s15, %s27
      %p83 = scmp.eq.s32.totalorder %s82, 0
      %s85 = sadd.s32 %s84, 1
      %s86 = scalar_select %p83, %s84, %s85
      %p89 = pneg %p83
      %p90 = scmp.eq.s32.totalorder %s8, 1
      %p91 = por %p89, %p90
      %p92 = scmp.ne.s32.totalorder %s84, %s87
      %p93 = scmp.eq.s32.totalorder %s8, 0
      %p94 = por %p92, %p93
      %p95 = scmp.ne.s32.totalorder %s84, %s87
      %p96 = scmp.eq.s32.totalorder %s13, 1
      %p97 = por %p95, %p96
      %p98 = scmp.ne.s32.totalorder %s87, %s88
      %p99 = scmp.eq.s32.totalorder %s13, 0
      %p100 = por %p98, %p99
      %p101 = scmp.ne.s32.totalorder %s87, %s88
      %p102 = scmp.eq.s32.totalorder %s14, 1
      %p103 = por %p101, %p102
      %p105 = scmp.ne.s32.totalorder %s88, %s104
      %p106 = scmp.eq.s32.totalorder %s14, 0
      %p107 = por %p105, %p106
      %p108 = scmp.le.s32.totalorder 1, %s8
      %p109 = scmp.lt.s32.totalorder %s8, 3
      %p110 = pnand %p108, %p109
      %p111 = pneg %p110
      // Predicated region
      $region9: #{inverse_fourier_transform.1} parent=5 // pred_check
        _
      $region10: #{inverse_fourier_transform.1} parent=5 // pred_check_branch
        %113 = sbr.rel (%p110) target = $region12
      $region11: #{inverse_fourier_transform.1} parent=5 // pred_region
        %s114 = ssub.s32 %s8, 1
        // Predicated region
        $region13: #{inverse_fourier_transform.1} parent=11 // pred_check
          %p115 = pneg %p46
        $region14: #{inverse_fourier_transform.1} parent=11 // pred_check_branch
          %117 = sbr.rel (%p115) target = $region16
        $region15: #{inverse_fourier_transform.1} parent=11 // pred_region
          %p118 = scmp.lt.s32.totalorder %s18, 0
          %s119 = scalar_select %p118, %s18, 0
          %s120 = smul.addr %s119, 8
          %s121 = scalar_lea.vmem %s0, %s120
        $region16: #{inverse_fourier_transform.1} parent=11 // pred_fallthru
          _
      $region12: #{inverse_fourier_transform.1} parent=5 // pred_fallthru
        _
      %p122 = scmp.lt.s32.totalorder %s8, 2
      // Predicated region
      $region17: #{inverse_fourier_transform.1} parent=5 // pred_check
        %p123 = pneg %p122
      $region18: #{inverse_fourier_transform.1} parent=5 // pred_check_branch
        %125 = sbr.rel (%p123) target = $region20
      $region19: #{inverse_fourier_transform.1} parent=5 // pred_region
        // Predicated region
        $region21: #{inverse_fourier_transform.1} parent=19 // pred_check
          %p126 = pneg %p68
        $region22: #{inverse_fourier_transform.1} parent=19 // pred_check_branch
          %128 = sbr.rel (%p126) target = $region24
        $region23: #{inverse_fourier_transform.1} parent=19 // pred_region
          %s129 = sand.u32 %s58, 1
          %s130 = sand.u32 %s58, 1
          %s131 = smul.addr %s130, 32
          %s132 = scalar_lea.vmem [#allocation3], %s131
          %s133 = smul.u32 4, %s16
          %s134 = smul.addr %s133, 2
          %s135 = sadd.s32 %s15, %s134
          %s136 = smul.addr %s135, 8
          %s137 = scalar_lea.vmem %s1, %s136
          // Predicated region
          $region25: #{inverse_fourier_transform.1} parent=23 // pred_check
            _
          $region26: #{inverse_fourier_transform.1} parent=23 // pred_check_branch
            %139 = sbr.rel (0) target = $region28
          $region27: #{inverse_fourier_transform.1} parent=23 // pred_region
            // Predicated region
            $region29: #{inverse_fourier_transform.1} parent=27 // pred_check
              _
            $region30: #{inverse_fourier_transform.1} parent=27 // pred_check_branch
              %141 = sbr.rel (0) target = $region32
            $region31: #{inverse_fourier_transform.1} parent=27 // pred_region
              // Predicated region
              $region44: #{inverse_fourier_transform.1} parent=31 // pred_check
                _
              $region45: #{inverse_fourier_transform.1} parent=31 // pred_check_branch
                %163 = sbr.rel (0) target = $region47
              $region46: #{inverse_fourier_transform.1} parent=31 // pred_region
                loop: start=0, step=1, limit=1
                $region48: #{inverse_fourier_transform.1} parent=46 // loop_pre_header
                  _
                $region49: #{inverse_fourier_transform.1} parent=46 // loop_header
                  %s165 = sphi 0, %s169
                  %p166 = scmp.ge.s32.totalorder %s165, 1
                  %s170 = sphi %s137, %s137
                  %s171 = sphi %s132, %s132
                $region50: #{inverse_fourier_transform.1} parent=46 // loop_header_branch
                  %168 = sbr.rel (%p166) target = $region54
                $region51: #{inverse_fourier_transform.1} parent=46 // loop_body
                  %v172 = vld [vmem:[%s170] sm:$0xff]
                  %173 = vst [vmem:[%s171] sm:$0xff] %v172
                  %v174 = vld [vmem:[%s170 + $0x10] sm:$0xff]
                  %175 = vst [vmem:[%s171 + $0x8] sm:$0xff] %v174
                  %v176 = vld [vmem:[%s170 + $0x20] sm:$0xff]
                  %177 = vst [vmem:[%s171 + $0x10] sm:$0xff] %v176
                  %v178 = vld [vmem:[%s170 + $0x30] sm:$0xff]
                  %179 = vst [vmem:[%s171 + $0x18] sm:$0xff] %v178
                $region52: #{inverse_fourier_transform.1} parent=46 // loop_footer
                  %s169 = sadd.s32 1, %s165
                $region53: #{inverse_fourier_transform.1} parent=46 // loop_footer_branch
                  %164 = sbr.rel target = $region49
                $region54: #{inverse_fourier_transform.1} parent=46 // loop_exit
                  _
              $region47: #{inverse_fourier_transform.1} parent=31 // pred_fallthru
                _
              // Predicated region
              $region55: #{inverse_fourier_transform.1} parent=31 // pred_check
                _
              $region56: #{inverse_fourier_transform.1} parent=31 // pred_check_branch
                %181 = sbr.rel target = $region58
              $region57: #{inverse_fourier_transform.1} parent=31 // pred_region
                _
              $region58: #{inverse_fourier_transform.1} parent=31 // pred_fallthru
                _
            $region32: #{inverse_fourier_transform.1} parent=27 // pred_fallthru
              _
            // Predicated region
            $region33: #{inverse_fourier_transform.1} parent=27 // pred_check
              _
            $region34: #{inverse_fourier_transform.1} parent=27 // pred_check_branch
              %143 = sbr.rel target = $region36
            $region35: #{inverse_fourier_transform.1} parent=27 // pred_region
              %s145 = ssub.s32 256, 1
              loop: start=0, step=1, limit=1
              $region37: #{inverse_fourier_transform.1} parent=35 // loop_pre_header
                _
              $region38: #{inverse_fourier_transform.1} parent=35 // loop_header
                %s147 = sphi 0, %s151
                %p148 = scmp.ge.s32.totalorder %s147, 1
                %s152 = sphi %s137, %s137
                %s153 = sphi %s132, %s132
              $region39: #{inverse_fourier_transform.1} parent=35 // loop_header_branch
                %150 = sbr.rel (%p148) target = $region43
              $region40: #{inverse_fourier_transform.1} parent=35 // loop_body
                %v154 = vld [vmem:[%s152] sm:%s145]
                %155 = vst [vmem:[%s153] sm:%s145] %v154
                %v156 = vld [vmem:[%s152 + $0x10] sm:%s145]
                %157 = vst [vmem:[%s153 + $0x8] sm:%s145] %v156
                %v158 = vld [vmem:[%s152 + $0x20] sm:%s145]
                %159 = vst [vmem:[%s153 + $0x10] sm:%s145] %v158
                %v160 = vld [vmem:[%s152 + $0x30] sm:%s145]
                %161 = vst [vmem:[%s153 + $0x18] sm:%s145] %v160
              $region41: #{inverse_fourier_transform.1} parent=35 // loop_footer
                %s151 = sadd.s32 1, %s147
              $region42: #{inverse_fourier_transform.1} parent=35 // loop_footer_branch
                %146 = sbr.rel target = $region38
              $region43: #{inverse_fourier_transform.1} parent=35 // loop_exit
                _
            $region36: #{inverse_fourier_transform.1} parent=27 // pred_fallthru
              _
          $region28: #{inverse_fourier_transform.1} parent=23 // pred_fallthru
            _
          %182 = vnop
        $region24: #{inverse_fourier_transform.1} parent=19 // pred_fallthru
          _
      $region20: #{inverse_fourier_transform.1} parent=5 // pred_fallthru
        _
      %p183 = scmp.le.s32.totalorder 1, %s8
      %p184 = scmp.lt.s32.totalorder %s8, 3
      %p185 = pnand %p183, %p184
      %p186 = pneg %p185
      // Predicated region
      $region59: #{inverse_fourier_transform.1} parent=5 // pred_check
        _
      $region60: #{inverse_fourier_transform.1} parent=5 // pred_check_branch
        %188 = sbr.rel (%p185) target = $region62
      $region61: #{inverse_fourier_transform.1} parent=5 // pred_region
        %s189 = ssub.s32 %s8, 1
        %s190 = sand.u32 %s61, 1
        %s191 = sand.u32 %s61, 1
        %s192 = smul.addr %s191, 32
        %s193 = scalar_lea.vmem [#allocation3], %s192
        // Predicated region
        $region63: #{inverse_fourier_transform.1} parent=61 // pred_check
          %p194 = pneg %p74
        $region64: #{inverse_fourier_transform.1} parent=61 // pred_check_branch
          %196 = sbr.rel (%p194) target = $region66
        $region65: #{inverse_fourier_transform.1} parent=61 // pred_region
          _
        $region66: #{inverse_fourier_transform.1} parent=61 // pred_fallthru
          _
        %p197 = scmp.lt.s32.totalorder %s18, 0
        %s198 = scalar_select %p197, %s18, 0
        %s199 = smul.addr %s198, 8
        %s200 = scalar_lea.vmem %s0, %s199
        %p201 = pneg %p46
        %p202 = pneg %p43
        %s203 = sand.u32 %s61, 1
        %s204 = sand.u32 %s61, 1
        %s205 = smul.addr %s204, 32
        %s206 = scalar_lea.vmem [#allocation3], %s205
        %p207 = pneg %p74
        %p208 = pneg %p71
        %p209 = pneg %p100
        %p210 = pneg %p97
        %s211 = sand.u32 %s87, 1
        %s212 = sand.u32 %s87, 1
        %s213 = smul.addr %s212, 16
        %s214 = scalar_lea.vmem [#allocation4], %s213
        %p215 = scmp.lt.s32.totalorder %s18, 0
        %s216 = scalar_select %p215, %s18, 0
        %s217 = smul.addr %s216, 8
        %s218 = scalar_lea.vmem %s0, %s217
        %s219 = smul.u32 4, %s18
        %p220 = scmp.eq.s32.totalorder %s18, 0
        // Predicated region
        $region67: #{inverse_fourier_transform.1} parent=61 // pred_check
          %p221 = pneg %p220
        $region68: #{inverse_fourier_transform.1} parent=61 // pred_check_branch
          %223 = sbr.rel (%p221) target = $region70
        $region69: #{inverse_fourier_transform.1} parent=61 // pred_region
          %224 = vst [vmem:[#allocation2] sm:$0xff] 0.0
          %225 = vst [vmem:[#allocation2 + $0x8] sm:$0xff] 0.0
        $region70: #{inverse_fourier_transform.1} parent=61 // pred_fallthru
          _
        %v226 = vld [vmem:[#allocation2] sm:$0xff]
        %v227 = vld [vmem:[#allocation2 + $0x8] sm:$0xff]
        %v228 = vld [vmem:[%s218] sm:$0xff]
        %v229 = vld [vmem:[%s218 + $0x8] sm:$0xff]
        %v230 = vld [vmem:[%s193] sm:$0xff]
        %v231 = vld [vmem:[%s193 + $0x8] sm:$0xff]
        %v232 = vld [vmem:[%s193 + $0x10] sm:$0xff]
        %v233 = vld [vmem:[%s193 + $0x18] sm:$0xff]
        %vm234 = vcmask 261120
        %v236 = vsel %vm234, %v228, 0
        %v239 = vsel %vm234, %v229, 0
        %241 = vmatprep.subr.mxu0 0.0
        %242 = vmatpush1.msra.mxu0 0.0
        %243 = vmatprep.subr.mxu0 0.0
        %244 = vmatpush1.msra.mxu0 0.0
        %245 = vmatprep.subr.mxu0 0.0
        %246 = vmatpush1.msra.mxu0 0.0
        %247 = vmatprep.subr.mxu0 0.0
        %248 = vmatpush1.msra.mxu0 0.0
        %249 = vmatprep.subr.mxu0 0.0
        %250 = vmatpush1.msra.mxu0 0.0
        %251 = vmatprep.subr.mxu0 0.0
        %252 = vmatpush1.msra.mxu0 0.0
        %253 = vmatprep.subr.mxu0 0.0
        %254 = vmatpush1.msra.mxu0 0.0
        %255 = vmatprep.subr.mxu0 0.0
        %256 = vmatpush1.msra.mxu0 0.0
        %257 = vmatprep.subr.mxu0 0.0
        %258 = vmatpush1.msra.mxu0 0.0
        %259 = vmatprep.subr.mxu0 0.0
        %260 = vmatpush1.msra.mxu0 0.0
        %261 = vmatprep.subr.mxu0 0.0
        %262 = vmatpush1.msra.mxu0 0.0
        %263 = vmatprep.subr.mxu0 0.0
        %264 = vmatpush1.msra.mxu0 0.0
        %265 = vmatprep.subr.mxu0 0.0
        %266 = vmatpush1.msra.mxu0 %v233
        %267 = vmatprep.subr.mxu0 0.0
        %268 = vmatpush1.msra.mxu0 %v232
        %269 = vmatprep.subr.mxu0 0.0
        %270 = vmatpush1.msra.mxu0 %v231
        %271 = vmatprep.subr.mxu0 0.0
        %272 = vmatpush1.msra.mxu0 %v230
        %273 = vmatprep.subr.mxu0 0.0
        %274 = vmatpush2.msra.mxu0 0.0
        %275 = vmatprep.subr.mxu0 0.0
        %276 = vmatpush2.msra.mxu0 0.0
        %277 = vmatprep.subr.mxu0 0.0
        %278 = vmatpush2.msra.mxu0 0.0
        %279 = vmatprep.subr.mxu0 0.0
        %280 = vmatpush2.msra.mxu0 0.0
        %281 = vmatprep.subr.mxu0 0.0
        %282 = vmatpush2.msra.mxu0 0.0
        %283 = vmatprep.subr.mxu0 0.0
        %284 = vmatpush2.msra.mxu0 0.0
        %285 = vmatprep.subr.mxu0 0.0
        %286 = vmatpush2.msra.mxu0 0.0
        %287 = vmatprep.subr.mxu0 0.0
        %288 = vmatpush2.msra.mxu0 0.0
        %289 = vmatprep.subr.mxu0 0.0
        %290 = vmatpush2.msra.mxu0 0.0
        %291 = vmatprep.subr.mxu0 0.0
        %292 = vmatpush2.msra.mxu0 0.0
        %293 = vmatprep.subr.mxu0 0.0
        %294 = vmatpush2.msra.mxu0 0.0
        %295 = vmatprep.subr.mxu0 0.0
        %296 = vmatpush2.msra.mxu0 0.0
        %297 = vmatprep.subr.mxu0 0.0
        %298 = vmatpush2.msra.mxu0 0.0
        %299 = vmatprep.subr.mxu0 0.0
        %300 = vmatpush2.msra.mxu0 0.0
        %301 = vmatprep.subr.mxu0 0.0
        %302 = vmatpush2.msra.mxu0 0.0
        %303 = vmatprep.subr.mxu0 0.0
        %304 = vmatpush2.msra.mxu0 0.0
        %305 = vmatprep.mubr.f32.mxu0 0.0
        %306 = vmatmul.mubr.f32.gmra.mxu0 %v236
        %v307 = vpop.f32.mrf.mxu0
        %v308 = vadd.f32 0.0, %v307
        %v309 = vpop.f32.mrf.mxu0
        %310 = vmatprep.mubr.f32.mxu0 0.0
        %311 = vmatmul.mubr.f32.gmra.mxu0 %v239
        %v312 = vpop.f32.mrf.mxu0
        %v313 = vadd.f32 0.0, %v312
        %v314 = vpop.f32.mrf.mxu0
        %315 = vdwg.mxu0
        %v316 = vadd.f32 %v226, %v308
        %v317 = vadd.f32 %v227, %v313
        %318 = vst [vmem:[#allocation2] sm:$0xff] %v316
        %319 = vst [vmem:[#allocation2 + $0x8] sm:$0xff] %v317
        // Predicated region
        $region71: #{inverse_fourier_transform.1} parent=61 // pred_check
          %p320 = pneg %p220
        $region72: #{inverse_fourier_transform.1} parent=61 // pred_check_branch
          %322 = sbr.rel (%p320) target = $region74
        $region73: #{inverse_fourier_transform.1} parent=61 // pred_region
          %v323 = vld [vmem:[#allocation2] sm:$0xff]
          %v324 = vld [vmem:[#allocation2 + $0x8] sm:$0xff]
          %325 = vst [vmem:[%s214] sm:$0xff] %v323
          %326 = vst [vmem:[%s214 + $0x8] sm:$0xff] %v324
        $region74: #{inverse_fourier_transform.1} parent=61 // pred_fallthru
          _
        %s327 = sand.u32 %s87, 1
        %s328 = sand.u32 %s87, 1
        %s329 = smul.addr %s328, 16
        %s330 = scalar_lea.vmem [#allocation4], %s329
        // Predicated region
        $region75: #{inverse_fourier_transform.1} parent=61 // pred_check
          %p331 = pneg %p97
        $region76: #{inverse_fourier_transform.1} parent=61 // pred_check_branch
          %333 = sbr.rel (%p331) target = $region78
        $region77: #{inverse_fourier_transform.1} parent=61 // pred_region
          %s334 = smul.addr %s17, 8
          %s335 = scalar_lea.vmem %s2, %s334
          // Predicated region
          $region79: #{inverse_fourier_transform.1} parent=77 // pred_check
            _
          $region80: #{inverse_fourier_transform.1} parent=77 // pred_check_branch
            %337 = sbr.rel (0) target = $region82
          $region81: #{inverse_fourier_transform.1} parent=77 // pred_region
            // Predicated region
            $region83: #{inverse_fourier_transform.1} parent=81 // pred_check
              _
            $region84: #{inverse_fourier_transform.1} parent=81 // pred_check_branch
              %339 = sbr.rel (0) target = $region86
            $region85: #{inverse_fourier_transform.1} parent=81 // pred_region
              // Predicated region
              $region98: #{inverse_fourier_transform.1} parent=85 // pred_check
                _
              $region99: #{inverse_fourier_transform.1} parent=85 // pred_check_branch
                %357 = sbr.rel (0) target = $region101
              $region100: #{inverse_fourier_transform.1} parent=85 // pred_region
                loop: start=0, step=1, limit=1
                $region102: #{inverse_fourier_transform.1} parent=100 // loop_pre_header
                  _
                $region103: #{inverse_fourier_transform.1} parent=100 // loop_header
                  %s359 = sphi 0, %s363
                  %p360 = scmp.ge.s32.totalorder %s359, 1
                  %s364 = sphi %s330, %s330
                  %s365 = sphi %s335, %s335
                $region104: #{inverse_fourier_transform.1} parent=100 // loop_header_branch
                  %362 = sbr.rel (%p360) target = $region108
                $region105: #{inverse_fourier_transform.1} parent=100 // loop_body
                  %v366 = vld [vmem:[%s364] sm:$0xff]
                  %367 = vst [vmem:[%s365] sm:$0xff] %v366
                  %v368 = vld [vmem:[%s364 + $0x8] sm:$0xff]
                  %369 = vst [vmem:[%s365 + $0x10] sm:$0xff] %v368
                $region106: #{inverse_fourier_transform.1} parent=100 // loop_footer
                  %s363 = sadd.s32 1, %s359
                $region107: #{inverse_fourier_transform.1} parent=100 // loop_footer_branch
                  %358 = sbr.rel target = $region103
                $region108: #{inverse_fourier_transform.1} parent=100 // loop_exit
                  _
              $region101: #{inverse_fourier_transform.1} parent=85 // pred_fallthru
                _
              // Predicated region
              $region109: #{inverse_fourier_transform.1} parent=85 // pred_check
                _
              $region110: #{inverse_fourier_transform.1} parent=85 // pred_check_branch
                %371 = sbr.rel target = $region112
              $region111: #{inverse_fourier_transform.1} parent=85 // pred_region
                _
              $region112: #{inverse_fourier_transform.1} parent=85 // pred_fallthru
                _
            $region86: #{inverse_fourier_transform.1} parent=81 // pred_fallthru
              _
            // Predicated region
            $region87: #{inverse_fourier_transform.1} parent=81 // pred_check
              _
            $region88: #{inverse_fourier_transform.1} parent=81 // pred_check_branch
              %341 = sbr.rel target = $region90
            $region89: #{inverse_fourier_transform.1} parent=81 // pred_region
              %s343 = ssub.s32 256, 1
              loop: start=0, step=1, limit=1
              $region91: #{inverse_fourier_transform.1} parent=89 // loop_pre_header
                _
              $region92: #{inverse_fourier_transform.1} parent=89 // loop_header
                %s345 = sphi 0, %s349
                %p346 = scmp.ge.s32.totalorder %s345, 1
                %s350 = sphi %s330, %s330
                %s351 = sphi %s335, %s335
              $region93: #{inverse_fourier_transform.1} parent=89 // loop_header_branch
                %348 = sbr.rel (%p346) target = $region97
              $region94: #{inverse_fourier_transform.1} parent=89 // loop_body
                %v352 = vld [vmem:[%s350] sm:%s343]
                %353 = vst [vmem:[%s351] sm:%s343] %v352
                %v354 = vld [vmem:[%s350 + $0x8] sm:%s343]
                %355 = vst [vmem:[%s351 + $0x10] sm:%s343] %v354
              $region95: #{inverse_fourier_transform.1} parent=89 // loop_footer
                %s349 = sadd.s32 1, %s345
              $region96: #{inverse_fourier_transform.1} parent=89 // loop_footer_branch
                %344 = sbr.rel target = $region92
              $region97: #{inverse_fourier_transform.1} parent=89 // loop_exit
                _
            $region90: #{inverse_fourier_transform.1} parent=81 // pred_fallthru
              _
          $region82: #{inverse_fourier_transform.1} parent=77 // pred_fallthru
            _
          %372 = vnop
        $region78: #{inverse_fourier_transform.1} parent=61 // pred_fallthru
          _
      $region62: #{inverse_fourier_transform.1} parent=5 // pred_fallthru
        _
      %p373 = scmp.le.s32.totalorder 2, %s8
      // Predicated region
      $region113: #{inverse_fourier_transform.1} parent=5 // pred_check
        %p374 = pneg %p373
      $region114: #{inverse_fourier_transform.1} parent=5 // pred_check_branch
        %376 = sbr.rel (%p374) target = $region116
      $region115: #{inverse_fourier_transform.1} parent=5 // pred_region
        %s377 = ssub.s32 %s8, 2
        // Predicated region
        $region117: #{inverse_fourier_transform.1} parent=115 // pred_check
          %p378 = pneg %p103
        $region118: #{inverse_fourier_transform.1} parent=115 // pred_check_branch
          %380 = sbr.rel (%p378) target = $region120
        $region119: #{inverse_fourier_transform.1} parent=115 // pred_region
          %s381 = sand.u32 %s88, 1
          %s382 = sand.u32 %s88, 1
          %s383 = smul.addr %s382, 16
          %s384 = scalar_lea.vmem [#allocation4], %s383
        $region120: #{inverse_fourier_transform.1} parent=115 // pred_fallthru
          _
      $region116: #{inverse_fourier_transform.1} parent=5 // pred_fallthru
        _
    $region6: #{inverse_fourier_transform.1} parent=1 // loop_footer
      %s12 = sadd.s32 1, %s8
    $region7: #{inverse_fourier_transform.1} parent=1 // loop_footer_branch
      %7 = sbr.rel target = $region3
    $region8: #{inverse_fourier_transform.1} parent=1 // loop_exit
      _

</llo_original>
